<compile_context>
chip_gen: v7x
topology: tpu7x:2x2x1
jax: 0.10.0
libtpu: 0.0.40
codegen_flags: <defaults>
</compile_context>

<pallas_src>
import jax
import jax.numpy as jnp
from jax.experimental import pallas as pl
from jax.experimental.pallas import tpu as pltpu


def _lambda_exp_kernel(x_ref, o_ref):
    # Elementwise hot path: func(x) = exp(x)  (EUP op, memory-bound overall).
    o_ref[...] = jnp.exp(x_ref[...])


def _round_up(v: int, m: int) -> int:
    return ((v + m - 1) // m) * m


def lambda_exp(
    x: jax.Array,
    *,
    cols: int = 1024,                    # lane-dense column width (multiple of 128)
    target_block_bytes: int = 6 << 20,   # ~6 MiB blocks (in+out dbl-buffer ~24 MiB VMEM)
    min_split_block_bytes: int = 1 << 20,  # don't shrink blocks below ~1 MiB just to add steps
    desired_steps: int = 4,              # target grid steps (feeds both v7x TCs + pipeline)
    vmem_limit_bytes: int = 40 << 20,    # explicit scoped-VMEM limit (legal on v5e/v6e/v7x)
    min_kernel_elements: int = 1 << 15,  # below this, let XLA fuse jnp.exp
) -> jax.Array:
    """Apply Lambda(func=exp) to a tensor via a Pallas TPU kernel."""
    orig_shape = x.shape
    n = int(x.size)

    # Small-input fast path: kernel launch + DMA setup dwarfs the exp itself.
    if n == 0 or n < min_kernel_elements:
        return jnp.exp(x)

    assert cols % 128 == 0, "cols must be a multiple of 128 (lane width)"
    itemsize = x.dtype.itemsize
    # dtype-aware sublane packing: 8 rows for 4B, 16 for 2B, 32 for 1B dtypes.
    sublane = max(8, 32 // itemsize)

    xf = x.reshape(-1)
    rows = n // cols
    tail = n - rows * cols
    if rows == 0:
        # Everything is a sub-row tail: too small to be worth a kernel launch.
        return jnp.exp(x)

    # --- block_rows selection ------------------------------------------------
    row_bytes = cols * itemsize
    max_block_rows = max(sublane,
                         (target_block_bytes // row_bytes) // sublane * sublane)
    min_block_rows = max(sublane,
                         (min_split_block_bytes // row_bytes) // sublane * sublane)
    # Rows per block that would yield `desired_steps` grid steps.
    split_rows = max(sublane, _round_up(pl.cdiv(rows, desired_steps), sublane))
    # Aim for >= desired_steps steps, but never drop blocks below
    # min_split_block_bytes (per-step overhead) nor above target_block_bytes.
    block_rows = min(max_block_rows, max(min_block_rows, split_rows))
    if block_rows >= rows:
        block_rows = rows  # single step; full row extent is always a legal block

    grid = (pl.cdiv(rows, block_rows),)

    # Divisible prefix as a lane-dense 2-D slab.  When tail == 0 this is a
    # pure (free) reshape of the contiguous input; no padding pass is done.
    x2d = xf[: rows * cols].reshape(rows, cols)

    out2d = pl.pallas_call(
        _lambda_exp_kernel,
        out_shape=jax.ShapeDtypeStruct((rows, cols), x.dtype),
        grid_spec=pltpu.PrefetchScalarGridSpec(
            num_scalar_prefetch=0,
            grid=grid,
            in_specs=[pl.BlockSpec((block_rows, cols), lambda i: (i, 0))],
            out_specs=pl.BlockSpec((block_rows, cols), lambda i: (i, 0)),
        ),
        compiler_params=pltpu.CompilerParams(
            dimension_semantics=("parallel",),
            vmem_limit_bytes=vmem_limit_bytes,
        ),
        cost_estimate=pl.CostEstimate(
            flops=0,
            transcendentals=rows * cols,
            bytes_accessed=2 * rows * cols * itemsize,
        ),
    )(x2d)

    out_flat = out2d.reshape(-1)
    if tail:
        # Tiny (< cols elements) remainder: plain exp, then stitch back on.
        out_flat = jnp.concatenate([out_flat, jnp.exp(xf[rows * cols:])])
    return out_flat.reshape(orig_shape)


# TODO(synk): `Lambda` can wrap arbitrary callables (e.g. .view()/reshape);
# pure metadata ops have no compute to express in a kernel, so only the
# elementwise-exp instantiation is implemented here.


if __name__ == "__main__":
    key = jax.random.PRNGKey(0)
    k1, k2, k3 = jax.random.split(key, 3)

    # 1) Small NCHW input consistent with the conv-net context (B=2, C=4, 16x16).
    #    Force the kernel path (bypass the tiny-input fast path) so the Pallas
    #    kernel itself is compiled, run and checked (single-block path).
    x_small = jax.random.normal(k1, (2, 4, 16, 16), dtype=jnp.float32)
    out_small = jax.block_until_ready(lambda_exp(x_small, min_kernel_elements=0))
    ref_small = jnp.exp(x_small)
    assert out_small.shape == x_small.shape and out_small.dtype == x_small.dtype
    assert jnp.allclose(out_small, ref_small, atol=1e-6, rtol=1e-6)

    # 2) Shape whose flattened size is NOT a multiple of 128: exercises the
    #    prefix-kernel + tiny-tail path (2*4*30*30 = 7*1024 + 32 elements),
    #    with no full-tensor pad/slice passes.
    x_pad = jax.random.normal(k2, (2, 4, 30, 30), dtype=jnp.float32)
    out_pad = jax.block_until_ready(lambda_exp(x_pad, min_kernel_elements=0))
    assert jnp.allclose(out_pad, jnp.exp(x_pad), atol=1e-6, rtol=1e-6)

    # 3) Slightly larger input with shrunk block params -> multi-step grid
    #    (exercises the >=4-parallel-step pipeline path on a small tensor).
    x_big = jax.random.normal(k3, (2, 8, 64, 64), dtype=jnp.float32)
    out_big = jax.block_until_ready(
        lambda_exp(x_big, min_kernel_elements=0,
                   target_block_bytes=256 << 10,
                   min_split_block_bytes=64 << 10))
    assert jnp.allclose(out_big, jnp.exp(x_big), atol=1e-6, rtol=1e-6)

    # 4) Default wrapper behaviour on the tiny demo tensor (fast path).
    out_fast = jax.block_until_ready(lambda_exp(x_small))
    assert jnp.allclose(out_fast, ref_small, atol=1e-6, rtol=1e-6)

    print("KERNEL_OK")
</pallas_src>

<mosaic_0001>
module attributes {stable_mosaic.version = 11 : i64} {
  func.func @_lambda_exp_kernel(%arg0: i32, %arg1: memref<2x1024xf32, #tpu.memory_space<vmem>>, %arg2: memref<2x1024xf32, #tpu.memory_space<vmem>>) attributes {dimension_semantics = [#tpu.dimension_semantics<parallel>], iteration_bounds = array<i64: 1>, scalar_prefetch = 0 : i64, scratch_operands = 0 : i64, tpu.core_type = #tpu.core_type<tc>, window_params = [{transform_indices = @transform_0, window_bounds = array<i64: 2, 1024>}, {transform_indices = @transform_1, window_bounds = array<i64: 2, 1024>}]} {
    %c0 = arith.constant 0 : index
    %c0_0 = arith.constant 0 : index
    %0 = vector.load %arg1[%c0, %c0_0] : memref<2x1024xf32, #tpu.memory_space<vmem>>, vector<2x1024xf32>
    %1 = math.exp %0 : vector<2x1024xf32>
    %c0_1 = arith.constant 0 : index
    %c0_2 = arith.constant 0 : index
    %2 = vector.load %arg2[%c0_1, %c0_2] : memref<2x1024xf32, #tpu.memory_space<vmem>>, vector<2x1024xf32>
    tpu.vector_store %arg2[%c0_1, %c0_2], %1 {strides = array<i32>} : memref<2x1024xf32, #tpu.memory_space<vmem>>, vector<2x1024xf32>,
    return
  }
  func.func @transform_0(%arg0: i32) -> (i32, i32) {
    %c0_i32 = arith.constant 0 : i32
    %c0_i32_0 = arith.constant 0 : i32
    return %arg0, %c0_i32 : i32, i32
  }
  func.func @transform_1(%arg0: i32) -> (i32, i32) {
    %c0_i32 = arith.constant 0 : i32
    %c0_i32_0 = arith.constant 0 : i32
    return %arg0, %c0_i32 : i32, i32
  }
}

</mosaic_0001>

<llo_original>
// kernel: tpu_custom_call.1
$region0: #{tpu_custom_call.1}
  #allocation0 [shape = 'u32[]', space=smem, size = 0x4, offset = 0x4, fixed_abs, tag = 'smem constant byte address 0x4 - core index']
  #allocation1 [shape = 'u32[144,128]{1,0:T(1,128)}', space=vmem, size = 0x12000, scoped, tag = 'internal scratch']
  %s0 = inlined_call_operand.hbm [shape: f32[2,1024], index: 0, kind: input, shape index: {}]
  %s1 = inlined_call_operand.hbm [shape: f32[2,1024], index: 1, kind: output, shape index: {}]
  %s2 = sld [smem:[#allocation0]]
  $region18: #{tpu_custom_call.1} parent=0
    _
  %s4 = ssub.s32 1, %s2
  %s5 = scalar_select 0, %s4, %s2
  $region1: #{tpu_custom_call.1} parent=0
    #allocation2 [shape = 'u8[8192]{0}', space=vmem, size = 0x2000, scoped, tag = 'input window, operand 0, single buffered']
    #allocation3 [shape = 's32[1]{0}', space=sflag, size = 0x4, scoped, tag = 'scoped memory for tpu_custom_call.1']
    #allocation4 [shape = 's32[1]{0}', space=sflag, size = 0x4, scoped, tag = 'scoped memory for tpu_custom_call.1']
    #allocation5 [shape = 'u8[8192]{0}', space=vmem, size = 0x2000, scoped, tag = 'output window, operand 0, single buffered']
    %6 = vsyncpa [#allocation3], 0
    %7 = vsyncpa [#allocation4], 0
    // Predicated region
    $region2: #{tpu_custom_call.1} parent=1 // pred_check
      _
    $region3: #{tpu_custom_call.1} parent=1 // pred_check_branch
      %9 = sbr.rel (0) target = $region5
    $region4: #{tpu_custom_call.1} parent=1 // pred_region
      %s11 = ssub.s32 256, 256
      %12 = vsyncadd [#allocation3], %s11
      %s14 = sshll.u32 [#allocation2], 4
      %s15 = int_to_ptr.vmem [resolvable:$true] %s14
      %17 = dma.hbm_to_vmem [thread:$0]  %s0, 256, %s15, [#allocation3]
    $region5: #{tpu_custom_call.1} parent=1 // pred_fallthru
      _
    // Predicated region
    $region6: #{tpu_custom_call.1} parent=1 // pred_check
      _
    $region7: #{tpu_custom_call.1} parent=1 // pred_check_branch
      %19 = sbr.rel (0) target = $region9
    $region8: #{tpu_custom_call.1} parent=1 // pred_region
      %20 = dma.done [#allocation3], 256
    $region9: #{tpu_custom_call.1} parent=1 // pred_fallthru
      _
    %v21 = vld [vmem:[#allocation2] sm:$0xff]
    %v22 = vld [vmem:[#allocation2 + $0x8] sm:$0xff]
    %v23 = vmul.f32 %v21, 1.442695
    %v24 = vpow.pop %v23
    %v25 = vmul.f32 %v22, 1.442695
    %v26 = vpow.pop %v25
    %27 = vst [vmem:[#allocation5] sm:$0xff] %v24
    %28 = vst [vmem:[#allocation5 + $0x8] sm:$0xff] %v26
    // Predicated region
    $region10: #{tpu_custom_call.1} parent=1 // pred_check
      _
    $region11: #{tpu_custom_call.1} parent=1 // pred_check_branch
      %30 = sbr.rel (0) target = $region13
    $region12: #{tpu_custom_call.1} parent=1 // pred_region
      %s32 = ssub.s32 256, 256
      %33 = vsyncadd [#allocation4], %s32
      %s35 = sshll.u32 [#allocation5], 4
      %s36 = int_to_ptr.vmem [resolvable:$true] %s35
      %38 = dma.vmem_to_hbm [thread:$0]  %s36, 256, %s1, [#allocation4]
    $region13: #{tpu_custom_call.1} parent=1 // pred_fallthru
      _
    // Predicated region
    $region14: #{tpu_custom_call.1} parent=1 // pred_check
      _
    $region15: #{tpu_custom_call.1} parent=1 // pred_check_branch
      %40 = sbr.rel (0) target = $region17
    $region16: #{tpu_custom_call.1} parent=1 // pred_region
      %41 = dma.done [#allocation4], 256
    $region17: #{tpu_custom_call.1} parent=1 // pred_fallthru
      _
    %42 = vsyncpa [#allocation3], 1
    %43 = vsyncpa [#allocation4], 1

</llo_original>
